<compile_context>
chip_gen: v7x
topology: tpu7x:2x2x1
jax: 0.10.0
libtpu: 0.0.40
codegen_flags: <defaults>
</compile_context>

<pallas_src>
import math
import numpy as np
import jax
import jax.numpy as jnp
from jax.experimental import pallas as pl
from jax.experimental.pallas import tpu as pltpu

BN_EPS = 1e-5
_SQRT_HALF = 0.7071067811865476


def _gelu(x):
    # exact (erf-based) GELU, matching nn.GELU() default
    return 0.5 * x * (1.0 + jax.lax.erf(x * _SQRT_HALF))


def bilinear_matrix(n_out, n_in):
    """Interpolation matrix for align_corners=True bilinear resize (one axis)."""
    R = np.zeros((n_out, n_in), np.float32)
    if n_in == 1:
        R[:, 0] = 1.0
        return R
    if n_out == 1:
        src = np.zeros((1,), np.float64)
    else:
        src = np.arange(n_out, dtype=np.float64) * (n_in - 1) / (n_out - 1)
    lo = np.clip(np.floor(src).astype(np.int64), 0, n_in - 1)
    hi = np.minimum(lo + 1, n_in - 1)
    frac = (src - lo).astype(np.float32)
    for i in range(n_out):
        R[i, lo[i]] += 1.0 - frac[i]
        R[i, hi[i]] += frac[i]
    return R


# ----------------------------------------------------------------------------
# Fused kernel: conv3x3 + BN(eval) + GELU + bilinear x2 upsample, one image/step
# ----------------------------------------------------------------------------
def upsample_kernel(xp_ref, t_ref, brow_ref, rh_ref, kw_ref, o_ref):
    # xp_ref  : (H+2, (W+2)*Cin)      zero-padded, channel-fastest input slab
    # t_ref   : (3*(W+2)*Cin, W*Cout) banded-Toeplitz conv weights (BN scale folded)
    # brow_ref: (1, W*Cout)           folded conv bias + BN shift, tiled across w
    # rh_ref  : (2H, H)               align_corners=True row-resize matrix
    # kw_ref  : (W*Cout, 2W*Cout)     kron(Rw^T, I_Cout) column-resize matrix
    # o_ref   : (2H, 2W*Cout)         lane-dense output slab (NHWC-flat)
    H = xp_ref.shape[0] - 2
    xv = xp_ref[...]
    # three vertically shifted full-lane row slabs, lane-concatenated (no stores)
    a = jnp.concatenate([xv[0:H], xv[1:H + 1], xv[2:H + 2]], axis=1)
    # conv3x3 + folded BN as ONE MXU matmul; result is already (H, W*Cout) layout
    y = jnp.dot(a, t_ref[...], preferred_element_type=jnp.float32)
    # bias + exact GELU (EUP/VALU; exact erf kept for nn.GELU() parity)
    y = _gelu(y + brow_ref[...])
    # x2 bilinear upsample (align_corners=True), channel-batched:
    #   out = Rh @ y @ kron(Rw^T, I_Cout)  -> single lane-dense store
    t = jnp.dot(rh_ref[...], y, preferred_element_type=jnp.float32)
    o_ref[...] = jnp.dot(t, kw_ref[...], preferred_element_type=jnp.float32)


# ----------------------------------------------------------------------------
# Wrapper (PyTorch NCHW in / NCHW out)
# ----------------------------------------------------------------------------
def upsample_forward(x, w, b, gamma=None, beta=None,
                     running_mean=None, running_var=None):
    """x: (B, Cin, H, W); w: (Cout, Cin, 3, 3); b: (Cout,) -> (B, Cout, 2H, 2W)."""
    B, Cin, H, W = x.shape
    Cout = w.shape[0]
    H2, W2 = 2 * H, 2 * W
    P = (W + 2) * Cin
    f32 = jnp.float32

    w_np = np.asarray(w, np.float32)
    b_np = np.asarray(b, np.float32)
    gamma_np = np.ones((Cout,), np.float32) if gamma is None else np.asarray(gamma, np.float32)
    beta_np = np.zeros((Cout,), np.float32) if beta is None else np.asarray(beta, np.float32)
    mean_np = np.zeros((Cout,), np.float32) if running_mean is None else np.asarray(running_mean, np.float32)
    var_np = np.ones((Cout,), np.float32) if running_var is None else np.asarray(running_var, np.float32)

    # eval-mode BatchNorm fold:  bn(z) = z*scale + shift
    scale = gamma_np / np.sqrt(var_np + BN_EPS)          # (Cout,)
    shift = beta_np - mean_np * scale                    # (Cout,)

    # banded-Toeplitz conv weights (BN scale folded):
    #   rows = (ky, wp, ci), cols = (w, co);  zero input padding handles borders
    T = np.zeros((3 * P, W * Cout), np.float32)
    for ky in range(3):
        for kx in range(3):
            blk = (w_np[:, :, ky, kx] * scale[:, None]).T        # (Cin, Cout)
            for wo in range(W):
                r0 = ky * P + (wo + kx) * Cin
                T[r0:r0 + Cin, wo * Cout:(wo + 1) * Cout] = blk

    # folded conv bias + BN shift, tiled across the w lane groups
    brow = np.tile(b_np * scale + shift, W).reshape(1, W * Cout)

    Rh = bilinear_matrix(H2, H)                                  # (2H, H)
    Rw = bilinear_matrix(W2, W)                                  # (2W, W)
    Kw = np.kron(Rw.T, np.eye(Cout, dtype=np.float32))           # (W*Cout, 2W*Cout)

    # host-side pack: NCHW -> zero-padded channel-fastest (B, H+2, (W+2)*Cin)
    xp = jnp.pad(jnp.transpose(x.astype(f32), (0, 2, 3, 1)),
                 ((0, 0), (1, 1), (1, 1), (0, 0))).reshape(B, H + 2, P)

    out = pl.pallas_call(
        upsample_kernel,
        grid=(B,),
        in_specs=[
            pl.BlockSpec((None, H + 2, P), lambda bb: (bb, 0, 0)),
            pl.BlockSpec((3 * P, W * Cout), lambda bb: (0, 0)),
            pl.BlockSpec((1, W * Cout), lambda bb: (0, 0)),
            pl.BlockSpec((H2, H), lambda bb: (0, 0)),
            pl.BlockSpec((W * Cout, W2 * Cout), lambda bb: (0, 0)),
        ],
        out_specs=pl.BlockSpec((None, H2, W2 * Cout), lambda bb: (bb, 0, 0)),
        out_shape=jax.ShapeDtypeStruct((B, H2, W2 * Cout), f32),
        compiler_params=pltpu.CompilerParams(
            dimension_semantics=("parallel",),
            vmem_limit_bytes=32 * 1024 * 1024),
    )(xp, jnp.asarray(T), jnp.asarray(brow), jnp.asarray(Rh), jnp.asarray(Kw))

    # NHWC-flat -> NCHW (free layout plumbing outside the kernel)
    return jnp.transpose(out.reshape(B, H2, W2, Cout), (0, 3, 1, 2))


# ----------------------------------------------------------------------------
# Plain-JAX reference (XLA conv) for a correctness cross-check
# ----------------------------------------------------------------------------
def reference_forward(x, w, b, gamma, beta, running_mean, running_var):
    B, Cin, H, W = x.shape
    hp = jax.lax.Precision.HIGHEST
    scale = gamma / jnp.sqrt(running_var + BN_EPS)
    shift = beta - running_mean * scale
    y = jax.lax.conv_general_dilated(
        x, w, (1, 1), ((1, 1), (1, 1)),
        dimension_numbers=("NCHW", "OIHW", "NCHW"), precision=hp)
    y = (y + b[None, :, None, None]) * scale[None, :, None, None] \
        + shift[None, :, None, None]
    y = jax.nn.gelu(y, approximate=False)
    Rh = jnp.asarray(bilinear_matrix(2 * H, H))
    Rw = jnp.asarray(bilinear_matrix(2 * W, W))
    t = jnp.einsum("ph,bchw->bcpw", Rh, y, precision=hp)
    return jnp.einsum("qw,bcpw->bcpq", Rw, t, precision=hp)


if __name__ == "__main__":
    B, Cin, Cout, H, W = 2, 4, 8, 16, 16

    key = jax.random.PRNGKey(0)
    kx, kw_, kb, kg, kbe, km, kv = jax.random.split(key, 7)
    x = jax.random.normal(kx, (B, Cin, H, W), jnp.float32)
    fan_out = 3 * 3 * Cout
    w = math.sqrt(2.0 / fan_out) * jax.random.normal(kw_, (Cout, Cin, 3, 3), jnp.float32)
    b = 0.01 * jax.random.normal(kb, (Cout,), jnp.float32)
    # eval-mode BatchNorm running stats / affine params (non-trivial, to exercise fold)
    gamma = 1.0 + 0.1 * jax.random.normal(kg, (Cout,), jnp.float32)
    beta = 0.1 * jax.random.normal(kbe, (Cout,), jnp.float32)
    rmean = 0.1 * jax.random.normal(km, (Cout,), jnp.float32)
    rvar = 1.0 + 0.1 * jnp.abs(jax.random.normal(kv, (Cout,), jnp.float32))

    out = upsample_forward(x, w, b, gamma, beta, rmean, rvar)
    out = jax.block_until_ready(out)
    assert out.shape == (B, Cout, 2 * H, 2 * W)

    ref = reference_forward(x, w, b, gamma, beta, rmean, rvar)
    ref = jax.block_until_ready(ref)
    err = float(np.max(np.abs(np.asarray(out) - np.asarray(ref))))
    assert np.allclose(np.asarray(out), np.asarray(ref), atol=5e-3, rtol=5e-3), err

    print("KERNEL_OK")
</pallas_src>

<mosaic_0001>
module attributes {stable_mosaic.version = 11 : i64} {
  func.func @upsample_kernel(%arg0: i32, %arg1: memref<1x18x72xf32, #tpu.memory_space<vmem>>, %arg2: memref<216x128xf32, #tpu.memory_space<vmem>>, %arg3: memref<1x128xf32, #tpu.memory_space<vmem>>, %arg4: memref<32x16xf32, #tpu.memory_space<vmem>>, %arg5: memref<128x256xf32, #tpu.memory_space<vmem>>, %arg6: memref<1x32x256xf32, #tpu.memory_space<vmem>>) attributes {dimension_semantics = [#tpu.dimension_semantics<parallel>], iteration_bounds = array<i64: 2>, scalar_prefetch = 0 : i64, scratch_operands = 0 : i64, tpu.core_type = #tpu.core_type<tc>, window_params = [{transform_indices = @transform_0, window_bounds = array<i64: 1, 18, 72>}, {pipeline_mode = #tpu.pipeline_mode<synchronous>, transform_indices = @transform_1, window_bounds = array<i64: 216, 128>}, {pipeline_mode = #tpu.pipeline_mode<synchronous>, transform_indices = @transform_2, window_bounds = array<i64: 1, 128>}, {pipeline_mode = #tpu.pipeline_mode<synchronous>, transform_indices = @transform_3, window_bounds = array<i64: 32, 16>}, {pipeline_mode = #tpu.pipeline_mode<synchronous>, transform_indices = @transform_4, window_bounds = array<i64: 128, 256>}, {transform_indices = @transform_5, window_bounds = array<i64: 1, 32, 256>}]} {
    %c0 = arith.constant 0 : index
    %c0_0 = arith.constant 0 : index
    %c0_1 = arith.constant 0 : index
    %0 = vector.load %arg1[%c0, %c0_0, %c0_1] : memref<1x18x72xf32, #tpu.memory_space<vmem>>, vector<1x18x72xf32>
    %1 = vector.shape_cast %0 : vector<1x18x72xf32> to vector<18x72xf32>
    %2 = vector.extract_strided_slice %1 {offsets = [0, 0], sizes = [16, 72], strides = [1, 1]} : vector<18x72xf32> to vector<16x72xf32>
    %3 = vector.extract_strided_slice %1 {offsets = [1, 0], sizes = [16, 72], strides = [1, 1]} : vector<18x72xf32> to vector<16x72xf32>
    %4 = vector.extract_strided_slice %1 {offsets = [2, 0], sizes = [16, 72], strides = [1, 1]} : vector<18x72xf32> to vector<16x72xf32>
    %5 = tpu.concatenate %2, %3, %4 in 1 : vector<16x72xf32>, vector<16x72xf32>, vector<16x72xf32> -> vector<16x216xf32>
    %c0_2 = arith.constant 0 : index
    %c0_3 = arith.constant 0 : index
    %6 = vector.load %arg2[%c0_2, %c0_3] : memref<216x128xf32, #tpu.memory_space<vmem>>, vector<216x128xf32>
    %cst = arith.constant dense<0.000000e+00> : vector<16x128xf32>
    %7 = tpu.matmul %5, %6, %cst {dimension_numbers = #tpu.dot_dimension_numbers<[1], [0], [0], [1], [0, 0, 1, 1], [], []>} : vector<16x216xf32>, vector<216x128xf32>, vector<16x128xf32> -> vector<16x128xf32>
    %c0_4 = arith.constant 0 : index
    %c0_5 = arith.constant 0 : index
    %8 = vector.load %arg3[%c0_4, %c0_5] : memref<1x128xf32, #tpu.memory_space<vmem>>, vector<1x128xf32>
    %9 = vector.broadcast %8 : vector<1x128xf32> to vector<16x128xf32>
    %10 = arith.addf %7, %9 : vector<16x128xf32>
    %cst_6 = arith.constant 5.000000e-01 : f32
    %11 = vector.broadcast %cst_6 : f32 to vector<16x128xf32>
    %12 = arith.mulf %11, %10 : vector<16x128xf32>
    %cst_7 = arith.constant 0.707106769 : f32
    %13 = vector.broadcast %cst_7 : f32 to vector<16x128xf32>
    %14 = arith.mulf %10, %13 : vector<16x128xf32>
    %15 = math.erf %14 : vector<16x128xf32>
    %cst_8 = arith.constant 1.000000e+00 : f32
    %16 = vector.broadcast %cst_8 : f32 to vector<16x128xf32>
    %17 = arith.addf %16, %15 : vector<16x128xf32>
    %18 = arith.mulf %12, %17 : vector<16x128xf32>
    %c0_9 = arith.constant 0 : index
    %c0_10 = arith.constant 0 : index
    %19 = vector.load %arg4[%c0_9, %c0_10] : memref<32x16xf32, #tpu.memory_space<vmem>>, vector<32x16xf32>
    %cst_11 = arith.constant dense<0.000000e+00> : vector<32x128xf32>
    %20 = tpu.matmul %19, %18, %cst_11 {dimension_numbers = #tpu.dot_dimension_numbers<[1], [0], [0], [1], [0, 0, 1, 1], [], []>} : vector<32x16xf32>, vector<16x128xf32>, vector<32x128xf32> -> vector<32x128xf32>
    %c0_12 = arith.constant 0 : index
    %c0_13 = arith.constant 0 : index
    %21 = vector.load %arg5[%c0_12, %c0_13] : memref<128x256xf32, #tpu.memory_space<vmem>>, vector<128x256xf32>
    %cst_14 = arith.constant dense<0.000000e+00> : vector<32x256xf32>
    %22 = tpu.matmul %20, %21, %cst_14 {dimension_numbers = #tpu.dot_dimension_numbers<[1], [0], [0], [1], [0, 0, 1, 1], [], []>} : vector<32x128xf32>, vector<128x256xf32>, vector<32x256xf32> -> vector<32x256xf32>
    %c0_15 = arith.constant 0 : index
    %c0_16 = arith.constant 0 : index
    %c0_17 = arith.constant 0 : index
    %23 = vector.load %arg6[%c0_15, %c0_16, %c0_17] : memref<1x32x256xf32, #tpu.memory_space<vmem>>, vector<1x32x256xf32>
    %24 = vector.shape_cast %23 : vector<1x32x256xf32> to vector<32x256xf32>
    %25 = vector.shape_cast %22 : vector<32x256xf32> to vector<1x32x256xf32>
    tpu.vector_store %arg6[%c0_15, %c0_16, %c0_17], %25 {strides = array<i32>} : memref<1x32x256xf32, #tpu.memory_space<vmem>>, vector<1x32x256xf32>,
    return
  }
  func.func @transform_0(%arg0: i32) -> (i32, i32, i32) {
    %c0_i32 = arith.constant 0 : i32
    %c0_i32_0 = arith.constant 0 : i32
    %c0_i32_1 = arith.constant 0 : i32
    return %arg0, %c0_i32, %c0_i32_0 : i32, i32, i32
  }
  func.func @transform_1(%arg0: i32) -> (i32, i32) {
    %c0_i32 = arith.constant 0 : i32
    %c0_i32_0 = arith.constant 0 : i32
    %c0_i32_1 = arith.constant 0 : i32
    return %c0_i32, %c0_i32_0 : i32, i32
  }
  func.func @transform_2(%arg0: i32) -> (i32, i32) {
    %c0_i32 = arith.constant 0 : i32
    %c0_i32_0 = arith.constant 0 : i32
    %c0_i32_1 = arith.constant 0 : i32
    return %c0_i32, %c0_i32_0 : i32, i32
  }
  func.func @transform_3(%arg0: i32) -> (i32, i32) {
    %c0_i32 = arith.constant 0 : i32
    %c0_i32_0 = arith.constant 0 : i32
    %c0_i32_1 = arith.constant 0 : i32
    return %c0_i32, %c0_i32_0 : i32, i32
  }
  func.func @transform_4(%arg0: i32) -> (i32, i32) {
    %c0_i32 = arith.constant 0 : i32
    %c0_i32_0 = arith.constant 0 : i32
    %c0_i32_1 = arith.constant 0 : i32
    return %c0_i32, %c0_i32_0 : i32, i32
  }
  func.func @transform_5(%arg0: i32) -> (i32, i32, i32) {
    %c0_i32 = arith.constant 0 : i32
    %c0_i32_0 = arith.constant 0 : i32
    %c0_i32_1 = arith.constant 0 : i32
    return %arg0, %c0_i32, %c0_i32_0 : i32, i32, i32
  }
}

</mosaic_0001>

<llo_original>
// kernel: tpu_custom_call.1
$region0: #{tpu_custom_call.1}
  #allocation0 [shape = 'u32[]', space=smem, size = 0x4, offset = 0x4, fixed_abs, tag = 'smem constant byte address 0x4 - core index']
  #allocation1 [shape = 'u32[144,128]{1,0:T(1,128)}', space=vmem, size = 0x12000, scoped, tag = 'internal scratch']
  %s0 = inlined_call_operand.vmem [shape: f32[2,18,72], index: 0, kind: input, shape index: {}]
  %s1 = inlined_call_operand.hbm [shape: f32[216,128], index: 1, kind: input, shape index: {}]
  %s2 = inlined_call_operand.vmem [shape: f32[1,128], index: 2, kind: input, shape index: {}]
  %s3 = inlined_call_operand.vmem [shape: f32[32,16], index: 3, kind: input, shape index: {}]
  %s4 = inlined_call_operand.hbm [shape: f32[128,256], index: 4, kind: input, shape index: {}]
  %s5 = inlined_call_operand.hbm [shape: f32[2,32,256], index: 5, kind: output, shape index: {}]
  %s6 = sld [smem:[#allocation0]]
  $region61: #{tpu_custom_call.1} parent=0
    _
  %s8 = ssub.s32 1, %s6
  %s9 = scalar_select 0, %s8, %s6
  $region1: #{tpu_custom_call.1} parent=0
    #allocation2 [shape = 'u8[110592]{0}', space=vmem, size = 0x1b000, scoped, tag = 'input window, operand 1, single buffered']
    #allocation3 [shape = 's32[2]{0}', space=sflag, size = 0x8, scoped, tag = 'scoped memory for tpu_custom_call.1']
    #allocation4 [shape = 's32[2]{0}', space=sflag, size = 0x8, scoped, tag = 'scoped memory for tpu_custom_call.1']
    #allocation5 [shape = 'u8[131072]{0}', space=vmem, size = 0x20000, scoped, tag = 'input window, operand 4, single buffered']
    #allocation6 [shape = 's32[1]{0}', space=sflag, size = 0x4, scoped, tag = 'scoped memory for tpu_custom_call.1']
    #allocation7 [shape = 'u8[65536]{0}', space=vmem, size = 0x10000, scoped, tag = 'output window, operand 0']
    %10 = vsyncpa [#allocation3], 0
    %11 = vsyncpa [#allocation6], 0
    %12 = vsyncpa [#allocation4], 0
    %s13 = scalar_lea.sflag [#allocation4], 1
    %14 = vsyncpa %s13, 0
    loop: start=0, step=1, limit=4
    $region2: #{tpu_custom_call.1} parent=1 // loop_pre_header
      _
    $region3: #{tpu_custom_call.1} parent=1 // loop_header
      %s16 = sphi 0, %s20
      %p17 = scmp.ge.s32.totalorder %s16, 4
      %s26 = sphi 0, %s28
      %s29 = sphi 0, %s26
      %s30 = sphi 0, %s29
      %s46 = sphi 0, %s30
      %s50 = sphi 0, %s50
      %s52 = sphi 0, %s50
      %s53 = sphi 0, %s52
      %s67 = sphi 0, %s53
      %s71 = sphi 0, %s71
      %s73 = sphi 0, %s71
      %s74 = sphi 0, %s73
      %s88 = sphi 0, %s74
      %s92 = sphi 0, %s92
      %s94 = sphi 0, %s92
      %s95 = sphi 0, %s94
      %s109 = sphi 0, %s95
      %s113 = sphi 0, %s113
      %s115 = sphi 0, %s113
      %s116 = sphi 0, %s115
      %s130 = sphi 0, %s116
      %s136 = sphi 0, %s138
      %s139 = sphi 0, %s136
      %s140 = sphi 0, %s139
      %s156 = sphi 0, %s140
    $region4: #{tpu_custom_call.1} parent=1 // loop_header_branch
      %19 = sbr.rel (%p17) target = $region8
    $region5: #{tpu_custom_call.1} parent=1 // loop_body
      %s21 = ssub.s32 %s16, 1
      %s22 = ssub.s32 %s16, 2
      %s23 = sadd.s32 %s16, 1
      %s24 = ssub.s32 %s16, %s23
      %p25 = scmp.eq.s32.totalorder %s24, 0
      %s27 = sadd.s32 %s26, 1
      %s28 = scalar_select %p25, %s26, %s27
      %p31 = pneg %p25
      %p32 = scmp.eq.s32.totalorder %s16, 1
      %p33 = por %p31, %p32
      %p34 = scmp.ne.s32.totalorder %s26, %s29
      %p35 = scmp.eq.s32.totalorder %s16, 0
      %p36 = por %p34, %p35
      %p37 = scmp.ne.s32.totalorder %s26, %s29
      %p38 = scmp.eq.s32.totalorder %s21, 1
      %p39 = por %p37, %p38
      %p40 = scmp.ne.s32.totalorder %s29, %s30
      %p41 = scmp.eq.s32.totalorder %s21, 0
      %p42 = por %p40, %p41
      %p43 = scmp.ne.s32.totalorder %s29, %s30
      %p44 = scmp.eq.s32.totalorder %s22, 1
      %p45 = por %p43, %p44
      %p47 = scmp.ne.s32.totalorder %s30, %s46
      %p48 = scmp.eq.s32.totalorder %s22, 0
      %p49 = por %p47, %p48
      %s51 = sadd.s32 %s50, 1
      %p54 = scmp.eq.s32.totalorder %s16, 1
      %p55 = scmp.ne.s32.totalorder %s50, %s52
      %p56 = scmp.eq.s32.totalorder %s16, 0
      %p57 = por %p55, %p56
      %p58 = scmp.ne.s32.totalorder %s50, %s52
      %p59 = scmp.eq.s32.totalorder %s21, 1
      %p60 = por %p58, %p59
      %p61 = scmp.ne.s32.totalorder %s52, %s53
      %p62 = scmp.eq.s32.totalorder %s21, 0
      %p63 = por %p61, %p62
      %p64 = scmp.ne.s32.totalorder %s52, %s53
      %p65 = scmp.eq.s32.totalorder %s22, 1
      %p66 = por %p64, %p65
      %p68 = scmp.ne.s32.totalorder %s53, %s67
      %p69 = scmp.eq.s32.totalorder %s22, 0
      %p70 = por %p68, %p69
      %s72 = sadd.s32 %s71, 1
      %p75 = scmp.eq.s32.totalorder %s16, 1
      %p76 = scmp.ne.s32.totalorder %s71, %s73
      %p77 = scmp.eq.s32.totalorder %s16, 0
      %p78 = por %p76, %p77
      %p79 = scmp.ne.s32.totalorder %s71, %s73
      %p80 = scmp.eq.s32.totalorder %s21, 1
      %p81 = por %p79, %p80
      %p82 = scmp.ne.s32.totalorder %s73, %s74
      %p83 = scmp.eq.s32.totalorder %s21, 0
      %p84 = por %p82, %p83
      %p85 = scmp.ne.s32.totalorder %s73, %s74
      %p86 = scmp.eq.s32.totalorder %s22, 1
      %p87 = por %p85, %p86
      %p89 = scmp.ne.s32.totalorder %s74, %s88
      %p90 = scmp.eq.s32.totalorder %s22, 0
      %p91 = por %p89, %p90
      %s93 = sadd.s32 %s92, 1
      %p96 = scmp.eq.s32.totalorder %s16, 1
      %p97 = scmp.ne.s32.totalorder %s92, %s94
      %p98 = scmp.eq.s32.totalorder %s16, 0
      %p99 = por %p97, %p98
      %p100 = scmp.ne.s32.totalorder %s92, %s94
      %p101 = scmp.eq.s32.totalorder %s21, 1
      %p102 = por %p100, %p101
      %p103 = scmp.ne.s32.totalorder %s94, %s95
      %p104 = scmp.eq.s32.totalorder %s21, 0
      %p105 = por %p103, %p104
      %p106 = scmp.ne.s32.totalorder %s94, %s95
      %p107 = scmp.eq.s32.totalorder %s22, 1
      %p108 = por %p106, %p107
      %p110 = scmp.ne.s32.totalorder %s95, %s109
      %p111 = scmp.eq.s32.totalorder %s22, 0
      %p112 = por %p110, %p111
      %s114 = sadd.s32 %s113, 1
      %p117 = scmp.eq.s32.totalorder %s16, 1
      %p118 = scmp.ne.s32.totalorder %s113, %s115
      %p119 = scmp.eq.s32.totalorder %s16, 0
      %p120 = por %p118, %p119
      %p121 = scmp.ne.s32.totalorder %s113, %s115
      %p122 = scmp.eq.s32.totalorder %s21, 1
      %p123 = por %p121, %p122
      %p124 = scmp.ne.s32.totalorder %s115, %s116
      %p125 = scmp.eq.s32.totalorder %s21, 0
      %p126 = por %p124, %p125
      %p127 = scmp.ne.s32.totalorder %s115, %s116
      %p128 = scmp.eq.s32.totalorder %s22, 1
      %p129 = por %p127, %p128
      %p131 = scmp.ne.s32.totalorder %s116, %s130
      %p132 = scmp.eq.s32.totalorder %s22, 0
      %p133 = por %p131, %p132
      %s134 = ssub.s32 %s16, %s23
      %p135 = scmp.eq.s32.totalorder %s134, 0
      %s137 = sadd.s32 %s136, 1
      %s138 = scalar_select %p135, %s136, %s137
      %p141 = pneg %p135
      %p142 = scmp.eq.s32.totalorder %s16, 1
      %p143 = por %p141, %p142
      %p144 = scmp.ne.s32.totalorder %s136, %s139
      %p145 = scmp.eq.s32.totalorder %s16, 0
      %p146 = por %p144, %p145
      %p147 = scmp.ne.s32.totalorder %s136, %s139
      %p148 = scmp.eq.s32.totalorder %s21, 1
      %p149 = por %p147, %p148
      %p150 = scmp.ne.s32.totalorder %s139, %s140
      %p151 = scmp.eq.s32.totalorder %s21, 0
      %p152 = por %p150, %p151
      %p153 = scmp.ne.s32.totalorder %s139, %s140
      %p154 = scmp.eq.s32.totalorder %s22, 1
      %p155 = por %p153, %p154
      %p157 = scmp.ne.s32.totalorder %s140, %s156
      %p158 = scmp.eq.s32.totalorder %s22, 0
      %p159 = por %p157, %p158
      %p160 = scmp.le.s32.totalorder 1, %s16
      %p161 = scmp.lt.s32.totalorder %s16, 3
      %p162 = pnand %p160, %p161
      %p163 = pneg %p162
      // Predicated region
      $region9: #{tpu_custom_call.1} parent=5 // pred_check
        _
      $region10: #{tpu_custom_call.1} parent=5 // pred_check_branch
        %165 = sbr.rel (%p162) target = $region12
      $region11: #{tpu_custom_call.1} parent=5 // pred_region
        %s166 = ssub.s32 %s16, 1
        // Predicated region
        $region13: #{tpu_custom_call.1} parent=11 // pred_check
          %p167 = pneg %p63
        $region14: #{tpu_custom_call.1} parent=11 // pred_check_branch
          %169 = sbr.rel (%p167) target = $region16
        $region15: #{tpu_custom_call.1} parent=11 // pred_region
          %s171 = ssub.s32 3456, 3456
          %172 = vsyncadd [#allocation3], %s171
          %s173 = sshll.u32 [#allocation2], 4
          %s174 = int_to_ptr.vmem [resolvable:$true] %s173
          %179 = dma.hbm_to_vmem [thread:$0]  %s1, 3456, %s174, [#allocation3], 128, 128, 8
        $region16: #{tpu_custom_call.1} parent=11 // pred_fallthru
          _
        // Predicated region
        $region17: #{tpu_custom_call.1} parent=11 // pred_check
          %p180 = pneg %p84
        $region18: #{tpu_custom_call.1} parent=11 // pred_check_branch
          %182 = sbr.rel (%p180) target = $region20
        $region19: #{tpu_custom_call.1} parent=11 // pred_region
          _
        $region20: #{tpu_custom_call.1} parent=11 // pred_fallthru
          _
        // Predicated region
        $region21: #{tpu_custom_call.1} parent=11 // pred_check
          %p183 = pneg %p105
        $region22: #{tpu_custom_call.1} parent=11 // pred_check_branch
          %185 = sbr.rel (%p183) target = $region24
        $region23: #{tpu_custom_call.1} parent=11 // pred_region
          _
        $region24: #{tpu_custom_call.1} parent=11 // pred_fallthru
          _
        // Predicated region
        $region25: #{tpu_custom_call.1} parent=11 // pred_check
          %p186 = pneg %p126
        $region26: #{tpu_custom_call.1} parent=11 // pred_check_branch
          %188 = sbr.rel (%p186) target = $region28
        $region27: #{tpu_custom_call.1} parent=11 // pred_region
          %s190 = ssub.s32 4096, 4096
          %191 = vsyncadd [#allocation6], %s190
          %s192 = sshll.u32 [#allocation5], 4
          %s193 = int_to_ptr.vmem [resolvable:$true] %s192
          %198 = dma.hbm_to_vmem [thread:$0]  %s4, 4096, %s193, [#allocation6], 256, 256, 16
        $region28: #{tpu_custom_call.1} parent=11 // pred_fallthru
          _
      $region12: #{tpu_custom_call.1} parent=5 // pred_fallthru
        _
      %p199 = scmp.lt.s32.totalorder %s16, 2
      // Predicated region
      $region29: #{tpu_custom_call.1} parent=5 // pred_check
        %p200 = pneg %p199
      $region30: #{tpu_custom_call.1} parent=5 // pred_check_branch
        %202 = sbr.rel (%p200) target = $region32
      $region31: #{tpu_custom_call.1} parent=5 // pred_region
        // Predicated region
        $region33: #{tpu_custom_call.1} parent=31 // pred_check
          %p203 = pneg %p36
        $region34: #{tpu_custom_call.1} parent=31 // pred_check_branch
          %205 = sbr.rel (%p203) target = $region36
        $region35: #{tpu_custom_call.1} parent=31 // pred_region
          %p206 = scmp.lt.s32.totalorder %s16, 1
          %s207 = scalar_select %p206, %s16, 1
          %s208 = smul.addr %s207, 3
          %s209 = smul.addr %s208, 8
          %s210 = scalar_lea.vmem %s0, %s209
        $region36: #{tpu_custom_call.1} parent=31 // pred_fallthru
          _
      $region32: #{tpu_custom_call.1} parent=5 // pred_fallthru
        _
      %p211 = scmp.le.s32.totalorder 1, %s16
      %p212 = scmp.lt.s32.totalorder %s16, 3
      %p213 = pnand %p211, %p212
      %p214 = pneg %p213
      // Predicated region
      $region37: #{tpu_custom_call.1} parent=5 // pred_check
        _
      $region38: #{tpu_custom_call.1} parent=5 // pred_check_branch
        %216 = sbr.rel (%p213) target = $region40
      $region39: #{tpu_custom_call.1} parent=5 // pred_region
        %s217 = ssub.s32 %s16, 1
        // Predicated region
        $region41: #{tpu_custom_call.1} parent=39 // pred_check
          %p218 = pneg %p63
        $region42: #{tpu_custom_call.1} parent=39 // pred_check_branch
          %220 = sbr.rel (%p218) target = $region44
        $region43: #{tpu_custom_call.1} parent=39 // pred_region
          %221 = dma.done [#allocation3], 3456
        $region44: #{tpu_custom_call.1} parent=39 // pred_fallthru
          _
        // Predicated region
        $region45: #{tpu_custom_call.1} parent=39 // pred_check
          %p222 = pneg %p126
        $region46: #{tpu_custom_call.1} parent=39 // pred_check_branch
          %224 = sbr.rel (%p222) target = $region48
        $region47: #{tpu_custom_call.1} parent=39 // pred_region
          %225 = dma.done [#allocation6], 4096
        $region48: #{tpu_custom_call.1} parent=39 // pred_fallthru
          _
        %p226 = scmp.lt.s32.totalorder %s21, 1
        %s227 = scalar_select %p226, %s21, 1
        %s228 = smul.addr %s227, 3
        %s229 = smul.addr %s228, 8
        %s230 = scalar_lea.vmem %s0, %s229
        %p231 = pneg %p42
        %p232 = pneg %p39
        %p233 = pneg %p63
        %p234 = pneg %p60
        %p235 = pneg %p84
        %p236 = pneg %p81
        %p237 = pneg %p105
        %p238 = pneg %p102
        %p239 = pneg %p126
        %p240 = pneg %p123
        %p241 = pneg %p152
        %p242 = pneg %p149
        %s243 = sand.u32 %s139, 1
        %s244 = scalar_lea.sflag [#allocation4], %s243
        %s245 = sand.u32 %s139, 1
        %s246 = smul.addr %s245, 64
        %s247 = scalar_lea.vmem [#allocation7], %s246
        %p248 = scmp.lt.s32.totalorder %s21, 1
        %s249 = scalar_select %p248, %s21, 1
        %s250 = smul.addr %s249, 3
        %s251 = smul.addr %s250, 8
        %s252 = scalar_lea.vmem %s0, %s251
        %v253 = vld [vmem:[%s252] sm:$0xff]
        %v254 = vld [vmem:[%s252 + $0x8] sm:$0xff]
        %v255 = vld [vmem:[%s252 + $0x10] sm:$0x3]
        %vm259 = vcmask 1046528
        %v260 = vrot.slane %v253, 1
        %v261 = vrot.slane %v254, 1
        %v262 = vsel %vm259, %v260, %v261
        %v263 = vrot.slane %v255, 1
        %v264 = vsel %vm259, %v261, %v263
        %265 = vrot.lane.b32.xlu0 %v262, 72
        %v266 = vpop.permute.xlu0 %265
        %267 = vrot.lane.b32.xlu0 %v264, 72
        %v268 = vpop.permute.xlu0 %267
        %vm271 = vcmask 1045504
        %v272 = vrot.slane %v253, 2
        %v273 = vrot.slane %v254, 2
        %v274 = vsel %vm271, %v272, %v273
        %v275 = vrot.slane %v255, 2
        %v276 = vsel %vm271, %v273, %v275
        %277 = vrot.lane.b32.xlu0 %v274, 16
        %v278 = vpop.permute.xlu0 %277
        %279 = vrot.lane.b32.xlu0 %v276, 16
        %v280 = vpop.permute.xlu0 %279
        %vm283 = vcmask 588800
        %v284 = vsel %vm283, %v253, %v266
        %v285 = vsel %vm283, %v254, %v268
        %vm286 = vcmask 130048
        %v287 = vsel %vm286, %v266, %v278
        %v288 = vsel %vm286, %v268, %v280
        %v289 = vld [vmem:[#allocation2] sm:$0xff]
        %v290 = vld [vmem:[#allocation2 + $0x8] sm:$0xff]
        %v291 = vld [vmem:[#allocation2 + $0x10] sm:$0xff]
        %v292 = vld [vmem:[#allocation2 + $0x18] sm:$0xff]
        %v293 = vld [vmem:[#allocation2 + $0x20] sm:$0xff]
        %v294 = vld [vmem:[#allocation2 + $0x28] sm:$0xff]
        %v295 = vld [vmem:[#allocation2 + $0x30] sm:$0xff]
        %v296 = vld [vmem:[#allocation2 + $0x38] sm:$0xff]
        %v297 = vld [vmem:[#allocation2 + $0x40] sm:$0xff]
        %v298 = vld [vmem:[#allocation2 + $0x48] sm:$0xff]
        %v299 = vld [vmem:[#allocation2 + $0x50] sm:$0xff]
        %v300 = vld [vmem:[#allocation2 + $0x58] sm:$0xff]
        %v301 = vld [vmem:[#allocation2 + $0x60] sm:$0xff]
        %v302 = vld [vmem:[#allocation2 + $0x68] sm:$0xff]
        %v303 = vld [vmem:[#allocation2 + $0x70] sm:$0xff]
        %v304 = vld [vmem:[#allocation2 + $0x78] sm:$0xff]
        %v305 = vld [vmem:[#allocation2 + $0x80] sm:$0xff]
        %v306 = vld [vmem:[#allocation2 + $0x88] sm:$0xff]
        %v307 = vld [vmem:[#allocation2 + $0x90] sm:$0xff]
        %v308 = vld [vmem:[#allocation2 + $0x98] sm:$0xff]
        %v309 = vld [vmem:[#allocation2 + $0xa0] sm:$0xff]
        %v310 = vld [vmem:[#allocation2 + $0xa8] sm:$0xff]
        %v311 = vld [vmem:[#allocation2 + $0xb0] sm:$0xff]
        %v312 = vld [vmem:[#allocation2 + $0xb8] sm:$0xff]
        %v313 = vld [vmem:[#allocation2 + $0xc0] sm:$0xff]
        %v314 = vld [vmem:[#allocation2 + $0xc8] sm:$0xff]
        %v315 = vld [vmem:[#allocation2 + $0xd0] sm:$0xff]
        %v316 = vld [vmem:[%s2] sm:$0x1]
        %v318 = vlaneseq
        %v319 = vshrl.u32 %v318, 7
        %v320 = vsub.s32 0, %v319
        %v321 = vrot.slane %v316, %v320
        %vm323 = vcmask 719872
        %v325 = vsel %vm323, %v287, 0
        %v328 = vsel %vm323, %v288, 0
        %330 = vmatprep.subr.mxu0 0.0
        %331 = vmatpush1.msra.mxu0 %v289
        %332 = vmatprep.subr.mxu0 0.0
        %333 = vmatpush1.msra.mxu0 %v290
        %334 = vmatprep.subr.mxu0 0.0
        %335 = vmatpush1.msra.mxu0 %v291
        %336 = vmatprep.subr.mxu0 0.0
        %337 = vmatpush1.msra.mxu0 %v292
        %338 = vmatprep.subr.mxu0 0.0
        %339 = vmatpush1.msra.mxu0 %v293
        %340 = vmatprep.subr.mxu0 0.0
        %341 = vmatpush1.msra.mxu0 %v294
        %342 = vmatprep.subr.mxu0 0.0
        %343 = vmatpush1.msra.mxu0 %v295
        %344 = vmatprep.subr.mxu0 0.0
        %345 = vmatpush1.msra.mxu0 %v296
        %346 = vmatprep.subr.mxu0 0.0
        %347 = vmatpush1.msra.mxu0 %v297
        %348 = vmatprep.subr.mxu0 0.0
        %349 = vmatpush1.msra.mxu0 %v298
        %350 = vmatprep.subr.mxu0 0.0
        %351 = vmatpush1.msra.mxu0 %v299
        %352 = vmatprep.subr.mxu0 0.0
        %353 = vmatpush1.msra.mxu0 %v300
        %354 = vmatprep.subr.mxu0 0.0
        %355 = vmatpush1.msra.mxu0 %v301
        %356 = vmatprep.subr.mxu0 0.0
        %357 = vmatpush1.msra.mxu0 %v302
        %358 = vmatprep.subr.mxu0 0.0
        %359 = vmatpush1.msra.mxu0 %v303
        %360 = vmatprep.subr.mxu0 0.0
        %361 = vmatpush1.msra.mxu0 %v304
        %362 = vmatprep.subr.mxu0 0.0
        %363 = vmatpush1.msra.mxu0 %v305
        %364 = vmatprep.subr.mxu0 0.0
        %365 = vmatpush1.msra.mxu0 %v306
        %366 = vmatprep.subr.mxu0 0.0
        %367 = vmatpush1.msra.mxu0 %v307
        %368 = vmatprep.subr.mxu0 0.0
        %369 = vmatpush1.msra.mxu0 %v308
        %370 = vmatprep.subr.mxu0 0.0
        %371 = vmatpush1.msra.mxu0 %v309
        %372 = vmatprep.subr.mxu0 0.0
        %373 = vmatpush1.msra.mxu0 %v310
        %374 = vmatprep.subr.mxu0 0.0
        %375 = vmatpush1.msra.mxu0 %v311
        %376 = vmatprep.subr.mxu0 0.0
        %377 = vmatpush1.msra.mxu0 %v312
        %378 = vmatprep.subr.mxu0 0.0
        %379 = vmatpush1.msra.mxu0 %v313
        %380 = vmatprep.subr.mxu0 0.0
        %381 = vmatpush1.msra.mxu0 %v314
        %382 = vmatprep.subr.mxu0 0.0
        %383 = vmatpush1.msra.mxu0 %v315
        %384 = vmatprep.subr.mxu0 0.0
        %385 = vmatpush1.msra.mxu0 0.0
        %386 = vmatprep.subr.mxu0 0.0
        %387 = vmatpush1.msra.mxu0 0.0
        %388 = vmatprep.subr.mxu0 0.0
        %389 = vmatpush1.msra.mxu0 0.0
        %390 = vmatprep.subr.mxu0 0.0
        %391 = vmatpush1.msra.mxu0 0.0
        %392 = vmatprep.subr.mxu0 0.0
        %393 = vmatpush1.msra.mxu0 0.0
        %394 = vmatprep.mubr.f32.mxu0 %v325
        %395 = vmatmul.mubr.f32.gmra.mrb[0].mxu0 %v284
        %v396 = vpop.f32.mrb[0].mxu0
        %v397 = vadd.f32 %v321, %v396
        %v398 = vpop.f32.mrb[0].mxu0
        %399 = vmatprep.mubr.f32.mxu0 %v328
        %400 = vmatmul.mubr.f32.gmra.mrb[0].mxu0 %v285
        %v401 = vpop.f32.mrb[0].mxu0
        %v402 = vadd.f32 %v321, %v401
        %v403 = vpop.f32.mrb[0].mxu0
        %404 = vdwg.mxu0
        %v405 = vmul.f32 %v397, 0.5
        %v406 = vmul.f32 %v402, 0.5
        %v407 = vmul.f32 %v397, 0.70710677
        %v408 = vmul.f32 %v402, 0.70710677
        %v409 = verf.f32.pop %v407
        %v410 = verf.f32.pop %v408
        %v411 = vadd.f32 %v409, 1.0
        %v412 = vadd.f32 %v410, 1.0
        %v413 = vmul.f32 %v405, %v411
        %v414 = vmul.f32 %v406, %v412
        %v415 = vld [vmem:[%s3] sm:$0xff]
        %v416 = vld [vmem:[%s3 + $0x8] sm:$0xff]
        %v417 = vld [vmem:[%s3 + $0x10] sm:$0xff]
        %v418 = vld [vmem:[%s3 + $0x18] sm:$0xff]
        %v420 = vsel %vm286, %v415, 0
        %v423 = vsel %vm286, %v416, 0
        %v426 = vsel %vm286, %v417, 0
        %v429 = vsel %vm286, %v418, 0
        %431 = vmatprep.subr.mxu0 0.0
        %432 = vmatpush1.msra.mxu0 %v413
        %433 = vmatprep.subr.mxu0 0.0
        %434 = vmatpush1.msra.mxu0 %v414
        %435 = vmatprep.subr.mxu0 0.0
        %436 = vmatpush1.msra.mxu0 0.0
        %437 = vmatprep.subr.mxu0 0.0
        %438 = vmatpush1.msra.mxu0 0.0
        %439 = vmatprep.subr.mxu0 0.0
        %440 = vmatpush1.msra.mxu0 0.0
        %441 = vmatprep.subr.mxu0 0.0
        %442 = vmatpush1.msra.mxu0 0.0
        %443 = vmatprep.subr.mxu0 0.0
        %444 = vmatpush1.msra.mxu0 0.0
        %445 = vmatprep.subr.mxu0 0.0
        %446 = vmatpush1.msra.mxu0 0.0
        %447 = vmatprep.subr.mxu0 0.0
        %448 = vmatpush1.msra.mxu0 0.0
        %449 = vmatprep.subr.mxu0 0.0
        %450 = vmatpush1.msra.mxu0 0.0
        %451 = vmatprep.subr.mxu0 0.0
        %452 = vmatpush1.msra.mxu0 0.0
        %453 = vmatprep.subr.mxu0 0.0
        %454 = vmatpush1.msra.mxu0 0.0
        %455 = vmatprep.subr.mxu0 0.0
        %456 = vmatpush1.msra.mxu0 0.0
        %457 = vmatprep.subr.mxu0 0.0
        %458 = vmatpush1.msra.mxu0 0.0
        %459 = vmatprep.subr.mxu0 0.0
        %460 = vmatpush1.msra.mxu0 0.0
        %461 = vmatprep.subr.mxu0 0.0
        %462 = vmatpush1.msra.mxu0 0.0
        %463 = vmatprep.subr.mxu0 0.0
        %464 = vmatpush1.msra.mxu0 0.0
        %465 = vmatprep.subr.mxu0 0.0
        %466 = vmatpush1.msra.mxu0 0.0
        %467 = vmatprep.subr.mxu0 0.0
        %468 = vmatpush1.msra.mxu0 0.0
        %469 = vmatprep.subr.mxu0 0.0
        %470 = vmatpush1.msra.mxu0 0.0
        %471 = vmatprep.subr.mxu0 0.0
        %472 = vmatpush1.msra.mxu0 0.0
        %473 = vmatprep.subr.mxu0 0.0
        %474 = vmatpush1.msra.mxu0 0.0
        %475 = vmatprep.subr.mxu0 0.0
        %476 = vmatpush1.msra.mxu0 0.0
        %477 = vmatprep.subr.mxu0 0.0
        %478 = vmatpush1.msra.mxu0 0.0
        %479 = vmatprep.subr.mxu0 0.0
        %480 = vmatpush1.msra.mxu0 0.0
        %481 = vmatprep.subr.mxu0 0.0
        %482 = vmatpush1.msra.mxu0 0.0
        %483 = vmatprep.subr.mxu0 0.0
        %484 = vmatpush1.msra.mxu0 0.0
        %485 = vmatprep.subr.mxu0 0.0
        %486 = vmatpush1.msra.mxu0 0.0
        %487 = vmatprep.subr.mxu0 0.0
        %488 = vmatpush1.msra.mxu0 0.0
        %489 = vmatprep.subr.mxu0 0.0
        %490 = vmatpush1.msra.mxu0 0.0
        %491 = vmatprep.subr.mxu0 0.0
        %492 = vmatpush1.msra.mxu0 0.0
        %493 = vmatprep.subr.mxu0 0.0
        %494 = vmatpush1.msra.mxu0 0.0
        %495 = vmatprep.mubr.f32.mxu0 0.0
        %496 = vmatmul.mubr.f32.gmra.mrb[0].mxu0 %v420
        %v497 = vpop.f32.mrb[0].mxu0
        %v498 = vadd.f32 0.0, %v497
        %v499 = vpop.f32.mrb[0].mxu0
        %500 = vmatprep.mubr.f32.mxu0 0.0
        %501 = vmatmul.mubr.f32.gmra.mrb[0].mxu0 %v423
        %v502 = vpop.f32.mrb[0].mxu0
        %v503 = vadd.f32 0.0, %v502
        %v504 = vpop.f32.mrb[0].mxu0
        %505 = vmatprep.mubr.f32.mxu0 0.0
        %506 = vmatmul.mubr.f32.gmra.mrb[0].mxu0 %v426
        %v507 = vpop.f32.mrb[0].mxu0
        %v508 = vadd.f32 0.0, %v507
        %v509 = vpop.f32.mrb[0].mxu0
        %510 = vmatprep.mubr.f32.mxu0 0.0
        %511 = vmatmul.mubr.f32.gmra.mrb[0].mxu0 %v429
        %v512 = vpop.f32.mrb[0].mxu0
        %v513 = vadd.f32 0.0, %v512
        %v514 = vpop.f32.mrb[0].mxu0
        %515 = vdwg.mxu0
        %v516 = vld [vmem:[#allocation5] sm:$0xff]
        %v517 = vld [vmem:[#allocation5 + $0x8] sm:$0xff]
        %v518 = vld [vmem:[#allocation5 + $0x10] sm:$0xff]
        %v519 = vld [vmem:[#allocation5 + $0x18] sm:$0xff]
        %v520 = vld [vmem:[#allocation5 + $0x20] sm:$0xff]
        %v521 = vld [vmem:[#allocation5 + $0x28] sm:$0xff]
        %v522 = vld [vmem:[#allocation5 + $0x30] sm:$0xff]
        %v523 = vld [vmem:[#allocation5 + $0x38] sm:$0xff]
        %v524 = vld [vmem:[#allocation5 + $0x40] sm:$0xff]
        %v525 = vld [vmem:[#allocation5 + $0x48] sm:$0xff]
        %v526 = vld [vmem:[#allocation5 + $0x50] sm:$0xff]
        %v527 = vld [vmem:[#allocation5 + $0x58] sm:$0xff]
        %v528 = vld [vmem:[#allocation5 + $0x60] sm:$0xff]
        %v529 = vld [vmem:[#allocation5 + $0x68] sm:$0xff]
        %v530 = vld [vmem:[#allocation5 + $0x70] sm:$0xff]
        %v531 = vld [vmem:[#allocation5 + $0x78] sm:$0xff]
        %v532 = vld [vmem:[#allocation5 + $0x80] sm:$0xff]
        %v533 = vld [vmem:[#allocation5 + $0x88] sm:$0xff]
        %v534 = vld [vmem:[#allocation5 + $0x90] sm:$0xff]
        %v535 = vld [vmem:[#allocation5 + $0x98] sm:$0xff]
        %v536 = vld [vmem:[#allocation5 + $0xa0] sm:$0xff]
        %v537 = vld [vmem:[#allocation5 + $0xa8] sm:$0xff]
        %v538 = vld [vmem:[#allocation5 + $0xb0] sm:$0xff]
        %v539 = vld [vmem:[#allocation5 + $0xb8] sm:$0xff]
        %v540 = vld [vmem:[#allocation5 + $0xc0] sm:$0xff]
        %v541 = vld [vmem:[#allocation5 + $0xc8] sm:$0xff]
        %v542 = vld [vmem:[#allocation5 + $0xd0] sm:$0xff]
        %v543 = vld [vmem:[#allocation5 + $0xd8] sm:$0xff]
        %v544 = vld [vmem:[#allocation5 + $0xe0] sm:$0xff]
        %v545 = vld [vmem:[#allocation5 + $0xe8] sm:$0xff]
        %v546 = vld [vmem:[#allocation5 + $0xf0] sm:$0xff]
        %v547 = vld [vmem:[#allocation5 + $0xf8] sm:$0xff]
        %548 = vmatprep.subr.mxu0 %v517
        %549 = vmatpush1.msra.mxu0 %v516
        %550 = vmatprep.subr.mxu0 %v519
        %551 = vmatpush1.msra.mxu0 %v518
        %552 = vmatprep.subr.mxu0 %v521
        %553 = vmatpush1.msra.mxu0 %v520
        %554 = vmatprep.subr.mxu0 %v523
        %555 = vmatpush1.msra.mxu0 %v522
        %556 = vmatprep.subr.mxu0 %v525
        %557 = vmatpush1.msra.mxu0 %v524
        %558 = vmatprep.subr.mxu0 %v527
        %559 = vmatpush1.msra.mxu0 %v526
        %560 = vmatprep.subr.mxu0 %v529
        %561 = vmatpush1.msra.mxu0 %v528
        %562 = vmatprep.subr.mxu0 %v531
        %563 = vmatpush1.msra.mxu0 %v530
        %564 = vmatprep.subr.mxu0 %v533
        %565 = vmatpush1.msra.mxu0 %v532
        %566 = vmatprep.subr.mxu0 %v535
        %567 = vmatpush1.msra.mxu0 %v534
        %568 = vmatprep.subr.mxu0 %v537
        %569 = vmatpush1.msra.mxu0 %v536
        %570 = vmatprep.subr.mxu0 %v539
        %571 = vmatpush1.msra.mxu0 %v538
        %572 = vmatprep.subr.mxu0 %v541
        %573 = vmatpush1.msra.mxu0 %v540
        %574 = vmatprep.subr.mxu0 %v543
        %575 = vmatpush1.msra.mxu0 %v542
        %576 = vmatprep.subr.mxu0 %v545
        %577 = vmatpush1.msra.mxu0 %v544
        %578 = vmatprep.subr.mxu0 %v547
        %579 = vmatpush1.msra.mxu0 %v546
        %580 = vmatprep.subr.mxu0 0.0
        %581 = vmatpush1.msra.mxu0 0.0
        %582 = vmatprep.subr.mxu0 0.0
        %583 = vmatpush1.msra.mxu0 0.0
        %584 = vmatprep.subr.mxu0 0.0
        %585 = vmatpush1.msra.mxu0 0.0
        %586 = vmatprep.subr.mxu0 0.0
        %587 = vmatpush1.msra.mxu0 0.0
        %588 = vmatprep.subr.mxu0 0.0
        %589 = vmatpush1.msra.mxu0 0.0
        %590 = vmatprep.subr.mxu0 0.0
        %591 = vmatpush1.msra.mxu0 0.0
        %592 = vmatprep.subr.mxu0 0.0
        %593 = vmatpush1.msra.mxu0 0.0
        %594 = vmatprep.subr.mxu0 0.0
        %595 = vmatpush1.msra.mxu0 0.0
        %596 = vmatprep.subr.mxu0 0.0
        %597 = vmatpush1.msra.mxu0 0.0
        %598 = vmatprep.subr.mxu0 0.0
        %599 = vmatpush1.msra.mxu0 0.0
        %600 = vmatprep.subr.mxu0 0.0
        %601 = vmatpush1.msra.mxu0 0.0
        %602 = vmatprep.subr.mxu0 0.0
        %603 = vmatpush1.msra.mxu0 0.0
        %604 = vmatprep.subr.mxu0 0.0
        %605 = vmatpush1.msra.mxu0 0.0
        %606 = vmatprep.subr.mxu0 0.0
        %607 = vmatpush1.msra.mxu0 0.0
        %608 = vmatprep.subr.mxu0 0.0
        %609 = vmatpush1.msra.mxu0 0.0
        %610 = vmatprep.subr.mxu0 0.0
        %611 = vmatpush1.msra.mxu0 0.0
        %612 = vmatprep.mubr.f32.mxu0 0.0
        %613 = vmatmul.mubr.f32.gmra.mrb[0].mxu0 %v498
        %v614 = vpop.f32.mrb[0].mxu0
        %v615 = vadd.f32 0.0, %v614
        %v616 = vpop.f32.mrb[0].mxu0
        %v617 = vadd.f32 0.0, %v616
        %618 = vmatprep.mubr.f32.mxu0 0.0
        %619 = vmatmul.mubr.f32.gmra.mrb[0].mxu0 %v503
        %v620 = vpop.f32.mrb[0].mxu0
        %v621 = vadd.f32 0.0, %v620
        %v622 = vpop.f32.mrb[0].mxu0
        %v623 = vadd.f32 0.0, %v622
        %624 = vmatprep.mubr.f32.mxu0 0.0
        %625 = vmatmul.mubr.f32.gmra.mrb[0].mxu0 %v508
        %v626 = vpop.f32.mrb[0].mxu0
        %v627 = vadd.f32 0.0, %v626
        %v628 = vpop.f32.mrb[0].mxu0
        %v629 = vadd.f32 0.0, %v628
        %630 = vmatprep.mubr.f32.mxu0 0.0
        %631 = vmatmul.mubr.f32.gmra.mrb[0].mxu0 %v513
        %v632 = vpop.f32.mrb[0].mxu0
        %v633 = vadd.f32 0.0, %v632
        %v634 = vpop.f32.mrb[0].mxu0
        %v635 = vadd.f32 0.0, %v634
        %636 = vdwg.mxu0
        %637 = vst [vmem:[%s247] sm:$0xff] %v615
        %638 = vst [vmem:[%s247 + $0x8] sm:$0xff] %v617
        %639 = vst [vmem:[%s247 + $0x10] sm:$0xff] %v621
        %640 = vst [vmem:[%s247 + $0x18] sm:$0xff] %v623
        %641 = vst [vmem:[%s247 + $0x20] sm:$0xff] %v627
        %642 = vst [vmem:[%s247 + $0x28] sm:$0xff] %v629
        %643 = vst [vmem:[%s247 + $0x30] sm:$0xff] %v633
        %644 = vst [vmem:[%s247 + $0x38] sm:$0xff] %v635
        %s645 = sand.u32 %s139, 1
        %s646 = scalar_lea.sflag [#allocation4], %s645
        %s647 = sand.u32 %s139, 1
        %s648 = smul.addr %s647, 64
        %s649 = scalar_lea.vmem [#allocation7], %s648
        // Predicated region
        $region49: #{tpu_custom_call.1} parent=39 // pred_check
          %p650 = pneg %p149
        $region50: #{tpu_custom_call.1} parent=39 // pred_check_branch
          %652 = sbr.rel (%p650) target = $region52
        $region51: #{tpu_custom_call.1} parent=39 // pred_region
          %s654 = ssub.s32 1024, 1024
          %655 = vsyncadd %s646, %s654
          %s656 = smul.addr %s21, 8
          %s657 = smul.addr %s656, 128
          %s658 = scalar_lea.hbm %s5, %s657
          %s659 = sshll.u32 %s649, 4
          %s660 = int_to_ptr.vmem [resolvable:$true] %s659
          %665 = dma.vmem_to_hbm [thread:$0]  %s660, 1024, %s658, %s646, 256, 256, 16
        $region52: #{tpu_custom_call.1} parent=39 // pred_fallthru
          _
      $region40: #{tpu_custom_call.1} parent=5 // pred_fallthru
        _
      %p666 = scmp.le.s32.totalorder 2, %s16
      // Predicated region
      $region53: #{tpu_custom_call.1} parent=5 // pred_check
        %p667 = pneg %p666
      $region54: #{tpu_custom_call.1} parent=5 // pred_check_branch
        %669 = sbr.rel (%p667) target = $region56
      $region55: #{tpu_custom_call.1} parent=5 // pred_region
        %s670 = ssub.s32 %s16, 2
        // Predicated region
        $region57: #{tpu_custom_call.1} parent=55 // pred_check
          %p671 = pneg %p155
        $region58: #{tpu_custom_call.1} parent=55 // pred_check_branch
          %673 = sbr.rel (%p671) target = $region60
        $region59: #{tpu_custom_call.1} parent=55 // pred_region
          %s674 = sand.u32 %s140, 1
          %s675 = scalar_lea.sflag [#allocation4], %s674
          %s676 = sand.u32 %s140, 1
          %s677 = smul.addr %s676, 64
          %s678 = scalar_lea.vmem [#allocation7], %s677
          %679 = dma.done %s675, 1024
        $region60: #{tpu_custom_call.1} parent=55 // pred_fallthru
          _
      $region56: #{tpu_custom_call.1} parent=5 // pred_fallthru
        _
    $region6: #{tpu_custom_call.1} parent=1 // loop_footer
      %s20 = sadd.s32 1, %s16
    $region7: #{tpu_custom_call.1} parent=1 // loop_footer_branch
      %15 = sbr.rel target = $region3
    $region8: #{tpu_custom_call.1} parent=1 // loop_exit
      _
    %680 = vsyncpa [#allocation3], 1
    %s681 = scalar_lea.sflag [#allocation3], 1
    %682 = vsyncpa %s681, 1
    %683 = vsyncpa [#allocation6], 1
    %684 = vsyncpa [#allocation4], 1
    %s685 = scalar_lea.sflag [#allocation4], 1
    %686 = vsyncpa %s685, 1

</llo_original>
